<compile_context>
chip_gen: v6e
topology: v6e:2x2x1
jax: 0.10.0
libtpu: 0.0.40
codegen_flags: <defaults>
</compile_context>

<pallas_src>
import functools
import math

import jax
import jax.numpy as jnp
from jax import lax
from jax.experimental import pallas as pl
from jax.experimental.pallas import tpu as pltpu


def _round_up(x, m):
    return ((x + m - 1) // m) * m


# Fuse the two matmuls into one K=(Dz+Hin) pass when the total contraction
# depth is small; keep the split form for large hidden sizes.
_FUSE_MAX_DIN = 1024
# Use the unrolled knockout k-WTA only for small trip counts.
_KNOCKOUT_MAX_TRIPS = 16
_N_BISECT = 26


# ----------------------------------------------------------------------------
# Kernel: logits = [z|h] @ W^T + b ; keep top-k per row, zero the rest
# ----------------------------------------------------------------------------
def _encoder_kernel(*refs, k, h_real, fuse, kwta_mode, trips, n_bisect):
    if fuse:
        z_ref, h_ref, wt_ref, b_ref, out_ref = refs
    else:
        z_ref, h_ref, wz_ref, wh_ref, b_ref, out_ref = refs

    nn = (((1,), (0,)), ((), ()))   # plain NN contraction: lhs dim1 x rhs dim0

    if fuse:
        # Assemble [z|h] in VMEM (cheap VPU/store), single MXU pass.
        x = jnp.concatenate([z_ref[...], h_ref[...]], axis=-1)
        logits = lax.dot_general(x.astype(jnp.bfloat16), wt_ref[...], nn,
                                 preferred_element_type=jnp.float32)
    else:
        zb = z_ref[...].astype(jnp.bfloat16)
        hb = h_ref[...].astype(jnp.bfloat16)
        logits = lax.dot_general(zb, wz_ref[...], nn,
                                 preferred_element_type=jnp.float32)
        logits = logits + lax.dot_general(hb, wh_ref[...], nn,
                                          preferred_element_type=jnp.float32)
    logits = logits + b_ref[...]                       # (Bt, Hp) + (1, Hp)

    # Mask lane-padding columns out of the threshold computation.  Padded
    # weight columns / bias are zero, so padded logits are exactly 0 and the
    # final select always writes 0 there (sliced off in the wrapper).
    col = lax.broadcasted_iota(jnp.int32, logits.shape, 1)
    valid = col < h_real
    neg = jnp.where(valid, logits, -jnp.inf)

    if kwta_mode == "min_knockout":
        # Knock out the (H - k) smallest values; threshold = min of survivors.
        work = jnp.where(valid, logits, jnp.inf)
        for _ in range(trips):                          # small, fully unrolled
            m = jnp.min(work, axis=-1, keepdims=True)
            work = jnp.where(work <= m, jnp.inf, work)
        thr = jnp.min(work, axis=-1, keepdims=True)
    elif kwta_mode == "max_knockout":
        # Knock out the k largest values; the k-th max is the threshold.
        work = neg
        thr = jnp.max(work, axis=-1, keepdims=True)
        for _ in range(trips - 1):                      # small, fully unrolled
            work = jnp.where(work >= thr, -jnp.inf, work)
            thr = jnp.max(work, axis=-1, keepdims=True)
    else:
        # Counting bisection: cost independent of k.  Invariant:
        #   count(logits >= lo) >= k   and   count(logits >= hi) may be < k.
        lo = jnp.min(jnp.where(valid, logits, jnp.inf), axis=-1, keepdims=True)
        hi = jnp.max(neg, axis=-1, keepdims=True)
        kf = float(k)

        def body(_, carry):
            lo, hi = carry
            mid = 0.5 * (lo + hi)
            cnt = jnp.sum((neg >= mid).astype(jnp.float32),
                          axis=-1, keepdims=True)
            ge = cnt >= kf
            return jnp.where(ge, mid, lo), jnp.where(ge, hi, mid)

        lo, hi = lax.fori_loop(0, n_bisect, body, (lo, hi), unroll=2)
        thr = lo

    out_ref[...] = jnp.where(logits >= thr, logits, 0.0).astype(out_ref.dtype)


# ----------------------------------------------------------------------------
# Wrapper
# ----------------------------------------------------------------------------
def _pick_bt(batch, hp):
    """Batch tile: big when Hp is small (amortize per-step overhead), small
    when Hp is big (bound the (bt,Hp) f32 working set in VMEM)."""
    if batch <= 256:
        return batch                 # single / full-dim block is always legal
    budget = 8 << 20                 # ~8 MiB for the live f32 row tiles
    bt = budget // (hp * 4 * 4)
    bt = max(64, min(512, bt))
    return int((bt // 8) * 8)


def _vmem_limit(bt, dz, hin, hp):
    io = 2 * bt * (dz + hin + hp) * 4            # double-buffered IO tiles
    wts = 2 * ((dz + hin) * hp * 2 + hp * 4)     # resident weights + bias
    live = 6 * bt * hp * 4                       # logits / work / masks
    need = io + wts + live + (4 << 20)
    return int(min(100 << 20, max(32 << 20, need)))


def encoder_forward(z, h_pre, params, *, act_sparsity):
    """z: (B, 2*tx) f32, h_pre: (B, H) f32 -> (B, H) f32."""
    B, dz = z.shape
    hin = h_pre.shape[1]
    h_real = params["h_real"]
    hp = params["hp"]
    fuse = params["fuse"]

    # KWinners: k = int((1 - act_sparsity) * n_units)
    k = int((1.0 - act_sparsity) * h_real)
    k = max(1, min(k, h_real))

    trips_min = h_real - k
    trips_max = k
    if min(trips_min, trips_max) <= _KNOCKOUT_MAX_TRIPS:
        if trips_min < trips_max:
            kwta_mode, trips = "min_knockout", trips_min
        else:
            kwta_mode, trips = "max_knockout", trips_max
        n_bisect = 0
    else:
        kwta_mode, trips, n_bisect = "bisect", 0, _N_BISECT

    bt = _pick_bt(B, hp)
    grid = (pl.cdiv(B, bt),)

    kernel = functools.partial(
        _encoder_kernel, k=k, h_real=h_real, fuse=fuse,
        kwta_mode=kwta_mode, trips=trips, n_bisect=n_bisect)

    def row_spec(d):
        return pl.BlockSpec((bt, d), lambda i: (i, 0))

    def resident_spec(shape):
        return pl.BlockSpec(shape, lambda i: (0, 0))

    if fuse:
        w_args = (params["wt"],)
        w_specs = [resident_spec((dz + hin, hp))]
    else:
        w_args = (params["wz"], params["wh"])
        w_specs = [resident_spec((dz, hp)), resident_spec((hin, hp))]

    out = pl.pallas_call(
        kernel,
        out_shape=jax.ShapeDtypeStruct((B, hp), jnp.float32),
        grid=grid,
        in_specs=[row_spec(dz), row_spec(hin), *w_specs,
                  resident_spec((1, hp))],
        out_specs=pl.BlockSpec((bt, hp), lambda i: (i, 0)),
        compiler_params=pltpu.CompilerParams(
            dimension_semantics=("parallel",),          # batch -> 2 TCs on v7x
            vmem_limit_bytes=_vmem_limit(bt, dz, hin, hp),
        ),
    )(z, h_pre, *w_args, params["bias"])

    return out[:, :h_real]


# ----------------------------------------------------------------------------
# Deterministic parameter construction (mirrors normalizeSparseWeights +
# SparseWeights.rezeroWeights of the PyTorch module), then one-time packing:
# pre-transpose to (Din, Hp), lane-pad out_features to a multiple of 128,
# cast to bf16 (split into z / h parts only when Din is large).
# ----------------------------------------------------------------------------
def make_params(key, tx, hidden_size, weight_sparsity):
    din = hidden_size + 2 * tx
    fan = int(din * weight_sparsity)
    gain = math.sqrt(2.0 / (1.0 + 5.0))   # calculate_gain('leaky_relu', sqrt(5))
    std = gain / math.sqrt(fan)
    w_bound = math.sqrt(3.0) * std
    b_bound = 1.0 / math.sqrt(fan)

    kw, kb, kz = jax.random.split(key, 3)
    w = jax.random.uniform(kw, (hidden_size, din), jnp.float32, -w_bound, w_bound)
    b = jax.random.uniform(kb, (hidden_size,), jnp.float32, -b_bound, b_bound)

    # SparseWeights: zero out (1 - weight_sparsity) of the inputs of each unit
    num_zeros = int(round((1.0 - weight_sparsity) * din))
    noise = jax.random.uniform(kz, (hidden_size, din))
    order = jnp.argsort(noise, axis=-1)
    zero_cols = order[:, :num_zeros]
    mask = jnp.ones((hidden_size, din), jnp.float32)
    mask = mask.at[jnp.arange(hidden_size)[:, None], zero_cols].set(0.0)
    return w * mask, b


def pack_params(w, b, tx):
    """One-time: transpose to (Din, Hp), pad out_features to 128, cast bf16."""
    h_real, din = w.shape
    dz = 2 * tx
    hp = _round_up(h_real, 128)
    wt = jnp.zeros((din, hp), jnp.bfloat16).at[:, :h_real].set(
        w.T.astype(jnp.bfloat16))
    bias = jnp.zeros((1, hp), jnp.float32).at[0, :h_real].set(b)
    fuse = din <= _FUSE_MAX_DIN
    params = dict(fuse=fuse, bias=bias, h_real=h_real, hp=hp)
    if fuse:
        params["wt"] = wt
    else:
        params["wz"] = wt[:dz]
        params["wh"] = wt[dz:]
    return params


if __name__ == "__main__":
    # ---- Test 1: small shapes (module-scale) -> fused matmul + knockout ----
    tx = 8
    hidden_size = 32
    weight_sparsity = 0.4       # also used as act_sparsity, as in the module
    batch = 2

    key = jax.random.PRNGKey(0)
    kp, kz_in, kh_in = jax.random.split(key, 3)

    weight, bias = make_params(kp, tx, hidden_size, weight_sparsity)
    params = pack_params(weight, bias, tx)
    assert params["fuse"]

    z = jax.random.normal(kz_in, (batch, 2 * tx), jnp.float32)
    h_pre = jax.random.normal(kh_in, (batch, hidden_size), jnp.float32)

    h = encoder_forward(z, h_pre, params, act_sparsity=weight_sparsity)
    h = jax.block_until_ready(h)
    assert h.shape == (batch, hidden_size)

    # pure-JAX reference (same bf16-rounded operands as the kernel)
    xb = jnp.concatenate([z, h_pre], -1).astype(jnp.bfloat16).astype(jnp.float32)
    wb = weight.astype(jnp.bfloat16).astype(jnp.float32)
    logits = xb @ wb.T + bias
    k = max(1, min(int((1.0 - weight_sparsity) * hidden_size), hidden_size))
    thr = jnp.sort(logits, axis=-1)[:, -k][:, None]
    ref = jnp.where(logits >= thr, logits, 0.0)
    assert jnp.allclose(h, ref, atol=1e-4, rtol=1e-4), "mismatch vs reference"

    # ---- Test 2: larger hidden -> split-weight path + bisection k-WTA ------
    tx2, hidden2, w_sp2, a_sp2, batch2 = 8, 1152, 0.3, 0.9, 4
    kp2, kz2, kh2 = jax.random.split(jax.random.PRNGKey(1), 3)
    w2, b2 = make_params(kp2, tx2, hidden2, w_sp2)
    params2 = pack_params(w2, b2, tx2)
    assert not params2["fuse"]

    z2 = jax.random.normal(kz2, (batch2, 2 * tx2), jnp.float32)
    h2_pre = jax.random.normal(kh2, (batch2, hidden2), jnp.float32)
    out2 = jax.block_until_ready(
        encoder_forward(z2, h2_pre, params2, act_sparsity=a_sp2))
    assert out2.shape == (batch2, hidden2)

    k2 = max(1, min(int((1.0 - a_sp2) * hidden2), hidden2))
    x2 = jnp.concatenate([z2, h2_pre], -1).astype(jnp.bfloat16).astype(jnp.float32)
    w2b = w2.astype(jnp.bfloat16).astype(jnp.float32)
    logits2 = x2 @ w2b.T + b2

    nz = out2 != 0.0
    cnt = nz.sum(-1)
    assert jnp.all((cnt >= k2) & (cnt <= k2 + 2)), cnt      # ~k winners kept
    # kept values equal the logits at the kept positions
    assert jnp.allclose(jnp.where(nz, out2, 0.0), jnp.where(nz, logits2, 0.0),
                        atol=2e-3, rtol=2e-3)
    # kept set is the top of each row
    min_kept = jnp.min(jnp.where(nz, logits2, jnp.inf), axis=-1)
    max_drop = jnp.max(jnp.where(nz, -jnp.inf, logits2), axis=-1)
    assert jnp.all(min_kept >= max_drop - 1e-3)

    print("KERNEL_OK")
</pallas_src>

<mosaic_0001>
module attributes {stable_mosaic.version = 11 : i64} {
  func.func @_encoder_kernel(%arg0: i32, %arg1: memref<2x16xf32, #tpu.memory_space<vmem>>, %arg2: memref<2x32xf32, #tpu.memory_space<vmem>>, %arg3: memref<48x128xbf16, #tpu.memory_space<vmem>>, %arg4: memref<1x128xf32, #tpu.memory_space<vmem>>, %arg5: memref<2x128xf32, #tpu.memory_space<vmem>>) attributes {dimension_semantics = [#tpu.dimension_semantics<parallel>], iteration_bounds = array<i64: 1>, scalar_prefetch = 0 : i64, scratch_operands = 0 : i64, tpu.core_type = #tpu.core_type<tc>, window_params = [{transform_indices = @transform_0, window_bounds = array<i64: 2, 16>}, {transform_indices = @transform_1, window_bounds = array<i64: 2, 32>}, {pipeline_mode = #tpu.pipeline_mode<synchronous>, transform_indices = @transform_2, window_bounds = array<i64: 48, 128>}, {pipeline_mode = #tpu.pipeline_mode<synchronous>, transform_indices = @transform_3, window_bounds = array<i64: 1, 128>}, {transform_indices = @transform_4, window_bounds = array<i64: 2, 128>}]} {
    %c0 = arith.constant 0 : index
    %c0_0 = arith.constant 0 : index
    %0 = vector.load %arg1[%c0, %c0_0] : memref<2x16xf32, #tpu.memory_space<vmem>>, vector<2x16xf32>
    %c0_1 = arith.constant 0 : index
    %c0_2 = arith.constant 0 : index
    %1 = vector.load %arg2[%c0_1, %c0_2] : memref<2x32xf32, #tpu.memory_space<vmem>>, vector<2x32xf32>
    %2 = tpu.concatenate %0, %1 in 1 : vector<2x16xf32>, vector<2x32xf32> -> vector<2x48xf32>
    %3 = arith.truncf %2 : vector<2x48xf32> to vector<2x48xbf16>
    %c0_3 = arith.constant 0 : index
    %c0_4 = arith.constant 0 : index
    %4 = vector.load %arg3[%c0_3, %c0_4] : memref<48x128xbf16, #tpu.memory_space<vmem>>, vector<48x128xbf16>
    %cst = arith.constant dense<0.000000e+00> : vector<2x128xf32>
    %5 = tpu.matmul %3, %4, %cst {dimension_numbers = #tpu.dot_dimension_numbers<[1], [0], [0], [1], [0, 0, 1, 1], [], []>} : vector<2x48xbf16>, vector<48x128xbf16>, vector<2x128xf32> -> vector<2x128xf32>
    %c0_5 = arith.constant 0 : index
    %c0_6 = arith.constant 0 : index
    %6 = vector.load %arg4[%c0_5, %c0_6] : memref<1x128xf32, #tpu.memory_space<vmem>>, vector<1x128xf32>
    %7 = vector.broadcast %6 : vector<1x128xf32> to vector<2x128xf32>
    %8 = arith.addf %5, %7 : vector<2x128xf32>
    %9 = tpu.iota {dimensions = array<i32: 1>} : vector<2x128xi32>
    %c32_i32 = arith.constant 32 : i32
    %10 = vector.broadcast %c32_i32 : i32 to vector<2x128xi32>
    %11 = arith.cmpi slt, %9, %10 : vector<2x128xi32>
    %cst_7 = arith.constant 0x7F800000 : f32
    %12 = vector.broadcast %cst_7 : f32 to vector<2x128xf32>
    %13 = arith.select %11, %8, %12 : vector<2x128xi1>, vector<2x128xf32>
    %cst_8 = arith.constant dense<0x7F800000> : vector<2xf32>
    %14 = vector.multi_reduction <minimumf>, %13, %cst_8 [1] : vector<2x128xf32> to vector<2xf32>
    %15 = vector.shape_cast %14 : vector<2xf32> to vector<2x1xf32>
    %16 = vector.broadcast %15 : vector<2x1xf32> to vector<2x128xf32>
    %17 = arith.cmpf ole, %13, %16 : vector<2x128xf32>
    %cst_9 = arith.constant 0x7F800000 : f32
    %18 = vector.broadcast %cst_9 : f32 to vector<2x128xf32>
    %19 = arith.select %17, %18, %13 : vector<2x128xi1>, vector<2x128xf32>
    %cst_10 = arith.constant dense<0x7F800000> : vector<2xf32>
    %20 = vector.multi_reduction <minimumf>, %19, %cst_10 [1] : vector<2x128xf32> to vector<2xf32>
    %21 = vector.shape_cast %20 : vector<2xf32> to vector<2x1xf32>
    %22 = vector.broadcast %21 : vector<2x1xf32> to vector<2x128xf32>
    %23 = arith.cmpf ole, %19, %22 : vector<2x128xf32>
    %cst_11 = arith.constant 0x7F800000 : f32
    %24 = vector.broadcast %cst_11 : f32 to vector<2x128xf32>
    %25 = arith.select %23, %24, %19 : vector<2x128xi1>, vector<2x128xf32>
    %cst_12 = arith.constant dense<0x7F800000> : vector<2xf32>
    %26 = vector.multi_reduction <minimumf>, %25, %cst_12 [1] : vector<2x128xf32> to vector<2xf32>
    %27 = vector.shape_cast %26 : vector<2xf32> to vector<2x1xf32>
    %28 = vector.broadcast %27 : vector<2x1xf32> to vector<2x128xf32>
    %29 = arith.cmpf ole, %25, %28 : vector<2x128xf32>
    %cst_13 = arith.constant 0x7F800000 : f32
    %30 = vector.broadcast %cst_13 : f32 to vector<2x128xf32>
    %31 = arith.select %29, %30, %25 : vector<2x128xi1>, vector<2x128xf32>
    %cst_14 = arith.constant dense<0x7F800000> : vector<2xf32>
    %32 = vector.multi_reduction <minimumf>, %31, %cst_14 [1] : vector<2x128xf32> to vector<2xf32>
    %33 = vector.shape_cast %32 : vector<2xf32> to vector<2x1xf32>
    %34 = vector.broadcast %33 : vector<2x1xf32> to vector<2x128xf32>
    %35 = arith.cmpf ole, %31, %34 : vector<2x128xf32>
    %cst_15 = arith.constant 0x7F800000 : f32
    %36 = vector.broadcast %cst_15 : f32 to vector<2x128xf32>
    %37 = arith.select %35, %36, %31 : vector<2x128xi1>, vector<2x128xf32>
    %cst_16 = arith.constant dense<0x7F800000> : vector<2xf32>
    %38 = vector.multi_reduction <minimumf>, %37, %cst_16 [1] : vector<2x128xf32> to vector<2xf32>
    %39 = vector.shape_cast %38 : vector<2xf32> to vector<2x1xf32>
    %40 = vector.broadcast %39 : vector<2x1xf32> to vector<2x128xf32>
    %41 = arith.cmpf ole, %37, %40 : vector<2x128xf32>
    %cst_17 = arith.constant 0x7F800000 : f32
    %42 = vector.broadcast %cst_17 : f32 to vector<2x128xf32>
    %43 = arith.select %41, %42, %37 : vector<2x128xi1>, vector<2x128xf32>
    %cst_18 = arith.constant dense<0x7F800000> : vector<2xf32>
    %44 = vector.multi_reduction <minimumf>, %43, %cst_18 [1] : vector<2x128xf32> to vector<2xf32>
    %45 = vector.shape_cast %44 : vector<2xf32> to vector<2x1xf32>
    %46 = vector.broadcast %45 : vector<2x1xf32> to vector<2x128xf32>
    %47 = arith.cmpf ole, %43, %46 : vector<2x128xf32>
    %cst_19 = arith.constant 0x7F800000 : f32
    %48 = vector.broadcast %cst_19 : f32 to vector<2x128xf32>
    %49 = arith.select %47, %48, %43 : vector<2x128xi1>, vector<2x128xf32>
    %cst_20 = arith.constant dense<0x7F800000> : vector<2xf32>
    %50 = vector.multi_reduction <minimumf>, %49, %cst_20 [1] : vector<2x128xf32> to vector<2xf32>
    %51 = vector.shape_cast %50 : vector<2xf32> to vector<2x1xf32>
    %52 = vector.broadcast %51 : vector<2x1xf32> to vector<2x128xf32>
    %53 = arith.cmpf ole, %49, %52 : vector<2x128xf32>
    %cst_21 = arith.constant 0x7F800000 : f32
    %54 = vector.broadcast %cst_21 : f32 to vector<2x128xf32>
    %55 = arith.select %53, %54, %49 : vector<2x128xi1>, vector<2x128xf32>
    %cst_22 = arith.constant dense<0x7F800000> : vector<2xf32>
    %56 = vector.multi_reduction <minimumf>, %55, %cst_22 [1] : vector<2x128xf32> to vector<2xf32>
    %57 = vector.shape_cast %56 : vector<2xf32> to vector<2x1xf32>
    %58 = vector.broadcast %57 : vector<2x1xf32> to vector<2x128xf32>
    %59 = arith.cmpf ole, %55, %58 : vector<2x128xf32>
    %cst_23 = arith.constant 0x7F800000 : f32
    %60 = vector.broadcast %cst_23 : f32 to vector<2x128xf32>
    %61 = arith.select %59, %60, %55 : vector<2x128xi1>, vector<2x128xf32>
    %cst_24 = arith.constant dense<0x7F800000> : vector<2xf32>
    %62 = vector.multi_reduction <minimumf>, %61, %cst_24 [1] : vector<2x128xf32> to vector<2xf32>
    %63 = vector.shape_cast %62 : vector<2xf32> to vector<2x1xf32>
    %64 = vector.broadcast %63 : vector<2x1xf32> to vector<2x128xf32>
    %65 = arith.cmpf ole, %61, %64 : vector<2x128xf32>
    %cst_25 = arith.constant 0x7F800000 : f32
    %66 = vector.broadcast %cst_25 : f32 to vector<2x128xf32>
    %67 = arith.select %65, %66, %61 : vector<2x128xi1>, vector<2x128xf32>
    %cst_26 = arith.constant dense<0x7F800000> : vector<2xf32>
    %68 = vector.multi_reduction <minimumf>, %67, %cst_26 [1] : vector<2x128xf32> to vector<2xf32>
    %69 = vector.shape_cast %68 : vector<2xf32> to vector<2x1xf32>
    %70 = vector.broadcast %69 : vector<2x1xf32> to vector<2x128xf32>
    %71 = arith.cmpf ole, %67, %70 : vector<2x128xf32>
    %cst_27 = arith.constant 0x7F800000 : f32
    %72 = vector.broadcast %cst_27 : f32 to vector<2x128xf32>
    %73 = arith.select %71, %72, %67 : vector<2x128xi1>, vector<2x128xf32>
    %cst_28 = arith.constant dense<0x7F800000> : vector<2xf32>
    %74 = vector.multi_reduction <minimumf>, %73, %cst_28 [1] : vector<2x128xf32> to vector<2xf32>
    %75 = vector.shape_cast %74 : vector<2xf32> to vector<2x1xf32>
    %76 = vector.broadcast %75 : vector<2x1xf32> to vector<2x128xf32>
    %77 = arith.cmpf ole, %73, %76 : vector<2x128xf32>
    %cst_29 = arith.constant 0x7F800000 : f32
    %78 = vector.broadcast %cst_29 : f32 to vector<2x128xf32>
    %79 = arith.select %77, %78, %73 : vector<2x128xi1>, vector<2x128xf32>
    %cst_30 = arith.constant dense<0x7F800000> : vector<2xf32>
    %80 = vector.multi_reduction <minimumf>, %79, %cst_30 [1] : vector<2x128xf32> to vector<2xf32>
    %81 = vector.shape_cast %80 : vector<2xf32> to vector<2x1xf32>
    %82 = vector.broadcast %81 : vector<2x1xf32> to vector<2x128xf32>
    %83 = arith.cmpf ole, %79, %82 : vector<2x128xf32>
    %cst_31 = arith.constant 0x7F800000 : f32
    %84 = vector.broadcast %cst_31 : f32 to vector<2x128xf32>
    %85 = arith.select %83, %84, %79 : vector<2x128xi1>, vector<2x128xf32>
    %cst_32 = arith.constant dense<0x7F800000> : vector<2xf32>
    %86 = vector.multi_reduction <minimumf>, %85, %cst_32 [1] : vector<2x128xf32> to vector<2xf32>
    %87 = vector.shape_cast %86 : vector<2xf32> to vector<2x1xf32>
    %88 = vector.broadcast %87 : vector<2x1xf32> to vector<2x128xf32>
    %89 = arith.cmpf ole, %85, %88 : vector<2x128xf32>
    %cst_33 = arith.constant 0x7F800000 : f32
    %90 = vector.broadcast %cst_33 : f32 to vector<2x128xf32>
    %91 = arith.select %89, %90, %85 : vector<2x128xi1>, vector<2x128xf32>
    %cst_34 = arith.constant dense<0x7F800000> : vector<2xf32>
    %92 = vector.multi_reduction <minimumf>, %91, %cst_34 [1] : vector<2x128xf32> to vector<2xf32>
    %93 = vector.shape_cast %92 : vector<2xf32> to vector<2x1xf32>
    %94 = vector.broadcast %93 : vector<2x1xf32> to vector<2x128xf32>
    %95 = arith.cmpf oge, %8, %94 : vector<2x128xf32>
    %cst_35 = arith.constant 0.000000e+00 : f32
    %96 = vector.broadcast %cst_35 : f32 to vector<2x128xf32>
    %97 = arith.select %95, %8, %96 : vector<2x128xi1>, vector<2x128xf32>
    %c0_36 = arith.constant 0 : index
    %c0_37 = arith.constant 0 : index
    %98 = vector.load %arg5[%c0_36, %c0_37] : memref<2x128xf32, #tpu.memory_space<vmem>>, vector<2x128xf32>
    tpu.vector_store %arg5[%c0_36, %c0_37], %97 {strides = array<i32>} : memref<2x128xf32, #tpu.memory_space<vmem>>, vector<2x128xf32>,
    return
  }
  func.func @transform_0(%arg0: i32) -> (i32, i32) {
    %c0_i32 = arith.constant 0 : i32
    %c0_i32_0 = arith.constant 0 : i32
    return %arg0, %c0_i32 : i32, i32
  }
  func.func @transform_1(%arg0: i32) -> (i32, i32) {
    %c0_i32 = arith.constant 0 : i32
    %c0_i32_0 = arith.constant 0 : i32
    return %arg0, %c0_i32 : i32, i32
  }
  func.func @transform_2(%arg0: i32) -> (i32, i32) {
    %c0_i32 = arith.constant 0 : i32
    %c0_i32_0 = arith.constant 0 : i32
    %c0_i32_1 = arith.constant 0 : i32
    return %c0_i32, %c0_i32_0 : i32, i32
  }
  func.func @transform_3(%arg0: i32) -> (i32, i32) {
    %c0_i32 = arith.constant 0 : i32
    %c0_i32_0 = arith.constant 0 : i32
    %c0_i32_1 = arith.constant 0 : i32
    return %c0_i32, %c0_i32_0 : i32, i32
  }
  func.func @transform_4(%arg0: i32) -> (i32, i32) {
    %c0_i32 = arith.constant 0 : i32
    %c0_i32_0 = arith.constant 0 : i32
    return %arg0, %c0_i32 : i32, i32
  }
}

</mosaic_0001>

<llo_original>
// kernel: tpu_custom_call.1
$region0: #{tpu_custom_call.1}
  #allocation0 [shape = 'u32[]', space=smem, size = 0x4, offset = 0x4, fixed_abs, tag = 'smem constant byte address 0x4 - core index']
  #allocation1 [shape = 'u32[144,128]{1,0:T(1,128)}', space=vmem, size = 0x12000, scoped, tag = 'internal scratch']
  %s0 = inlined_call_operand.hbm [shape: f32[2,16], index: 0, kind: input, shape index: {}]
  %s1 = inlined_call_operand.hbm [shape: f32[2,32], index: 1, kind: input, shape index: {}]
  %s2 = inlined_call_operand.hbm [shape: bf16[48,128], index: 2, kind: input, shape index: {}]
  %s3 = inlined_call_operand.vmem [shape: f32[1,128], index: 3, kind: input, shape index: {}]
  %s4 = inlined_call_operand.hbm [shape: f32[2,128], index: 4, kind: output, shape index: {}]
  %s5 = sld [smem:[#allocation0]]
  $region38: #{tpu_custom_call.1} parent=0
    _
  %s7 = ssub.s32 1, %s5
  %s8 = scalar_select 0, %s7, %s5
  $region1: #{tpu_custom_call.1} parent=0
    #allocation2 [shape = 'u8[1024]{0}', space=vmem, size = 0x400, scoped, tag = 'input window, operand 0, single buffered']
    #allocation3 [shape = 's32[1]{0}', space=sflag, size = 0x4, scoped, tag = 'scoped memory for tpu_custom_call.1']
    #allocation4 [shape = 's32[1]{0}', space=sflag, size = 0x4, scoped, tag = 'scoped memory for tpu_custom_call.1']
    #allocation5 [shape = 'u8[1024]{0}', space=vmem, size = 0x400, scoped, tag = 'input window, operand 1, single buffered']
    #allocation6 [shape = 's32[1]{0}', space=sflag, size = 0x4, scoped, tag = 'scoped memory for tpu_custom_call.1']
    #allocation7 [shape = 'u8[12288]{0}', space=vmem, size = 0x3000, scoped, tag = 'input window, operand 2, single buffered']
    #allocation8 [shape = 'u8[1024]{0}', space=vmem, size = 0x400, scoped, tag = 'output window, operand 0, single buffered']
    %9 = vsyncpa [#allocation3], 0
    %10 = vsyncpa [#allocation6], 0
    %11 = vsyncpa [#allocation4], 0
    // Predicated region
    $region2: #{tpu_custom_call.1} parent=1 // pred_check
      _
    $region3: #{tpu_custom_call.1} parent=1 // pred_check_branch
      %13 = sbr.rel (0) target = $region5
    $region4: #{tpu_custom_call.1} parent=1 // pred_region
      %s15 = ssub.s32 32, 32
      %16 = vsyncadd [#allocation3], %s15
      %s18 = sshll.u32 [#allocation2], 4
      %s19 = int_to_ptr.vmem [resolvable:$true] %s18
      %21 = dma.hbm_to_vmem [thread:$0]  %s0, 32, %s19, [#allocation3]
    $region5: #{tpu_custom_call.1} parent=1 // pred_fallthru
      _
    // Predicated region
    $region6: #{tpu_custom_call.1} parent=1 // pred_check
      _
    $region7: #{tpu_custom_call.1} parent=1 // pred_check_branch
      %23 = sbr.rel (0) target = $region9
    $region8: #{tpu_custom_call.1} parent=1 // pred_region
      %s25 = ssub.s32 32, 32
      %26 = vsyncadd [#allocation6], %s25
      %s28 = sshll.u32 [#allocation5], 4
      %s29 = int_to_ptr.vmem [resolvable:$true] %s28
      %31 = dma.hbm_to_vmem [thread:$0]  %s1, 32, %s29, [#allocation6]
    $region9: #{tpu_custom_call.1} parent=1 // pred_fallthru
      _
    // Predicated region
    $region10: #{tpu_custom_call.1} parent=1 // pred_check
      _
    $region11: #{tpu_custom_call.1} parent=1 // pred_check_branch
      %33 = sbr.rel (0) target = $region13
    $region12: #{tpu_custom_call.1} parent=1 // pred_region
      %s35 = ssub.s32 384, 384
      %36 = vsyncadd [#allocation6], %s35
      %s37 = sshll.u32 [#allocation7], 4
      %s38 = int_to_ptr.vmem [resolvable:$true] %s37
      %43 = dma.hbm_to_vmem [thread:$0]  %s2, 384, %s38, [#allocation6], 64, 64, 4
    $region13: #{tpu_custom_call.1} parent=1 // pred_fallthru
      _
    // Predicated region
    $region14: #{tpu_custom_call.1} parent=1 // pred_check
      _
    $region15: #{tpu_custom_call.1} parent=1 // pred_check_branch
      %45 = sbr.rel (0) target = $region17
    $region16: #{tpu_custom_call.1} parent=1 // pred_region
      _
    $region17: #{tpu_custom_call.1} parent=1 // pred_fallthru
      _
    // Predicated region
    $region18: #{tpu_custom_call.1} parent=1 // pred_check
      _
    $region19: #{tpu_custom_call.1} parent=1 // pred_check_branch
      %47 = sbr.rel (0) target = $region21
    $region20: #{tpu_custom_call.1} parent=1 // pred_region
      %48 = dma.done [#allocation3], 32
    $region21: #{tpu_custom_call.1} parent=1 // pred_fallthru
      _
    // Predicated region
    $region22: #{tpu_custom_call.1} parent=1 // pred_check
      _
    $region23: #{tpu_custom_call.1} parent=1 // pred_check_branch
      %50 = sbr.rel (0) target = $region25
    $region24: #{tpu_custom_call.1} parent=1 // pred_region
      %51 = dma.done [#allocation6], 32
    $region25: #{tpu_custom_call.1} parent=1 // pred_fallthru
      _
    // Predicated region
    $region26: #{tpu_custom_call.1} parent=1 // pred_check
      _
    $region27: #{tpu_custom_call.1} parent=1 // pred_check_branch
      %53 = sbr.rel (0) target = $region29
    $region28: #{tpu_custom_call.1} parent=1 // pred_region
      %54 = dma.done [#allocation6], 384
    $region29: #{tpu_custom_call.1} parent=1 // pred_fallthru
      _
    %v56 = vld [vmem:[#allocation2] sm:$0x3]
    %v57 = vld [vmem:[#allocation5] sm:$0x3]
    %59 = vrot.lane.b32.xlu0 %v57, 16
    %v60 = vpop.permute.xlu0 %59
    %vm62 = vcmask 130048
    %v63 = vsel %vm62, %v56, %v60
    %v64 = vpack.c.bf16 %v63, %v63
    %v65 = vld [vmem:[#allocation7] sm:$0xf]
    %v66 = vld [vmem:[#allocation7 + $0x4] sm:$0xf]
    %v67 = vld [vmem:[#allocation7 + $0x8] sm:$0xf]
    %v68 = vld [vmem:[#allocation7 + $0xc] sm:$0xf]
    %v69 = vld [vmem:[#allocation7 + $0x10] sm:$0xf]
    %v70 = vld [vmem:[#allocation7 + $0x14] sm:$0xf]
    %v71 = vld [vmem:[%s3] sm:$0x1]
    %v73 = vlaneseq
    %v74 = vshrl.u32 %v73, 7
    %v75 = vsub.s32 0, %v74
    %v76 = vrot.slane %v71, %v75
    %v84 = vunpack.c.l.b16 %v65
    %v85 = vunpack.c.l.b16 %v66
    %v86 = vunpack.c.l.b16 %v67
    %v87 = vunpack.c.l.b16 %v68
    %v88 = vunpack.c.l.b16 %v69
    %v89 = vunpack.c.l.b16 %v70
    %v90 = vpack.c.b16 %v85, %v84
    %v91 = vpack.c.b16 %v87, %v86
    %v92 = vpack.c.b16 %v89, %v88
    %vm96 = vcmask 392192
    %v98 = vsel %vm96, %v64, 0
    %100 = vmatprep.subr.bf16.mxu0 0
    %101 = vmatpush1.bf16.msra.mxu0 0
    %102 = vmatprep.subr.bf16.mxu0 0
    %103 = vmatpush1.bf16.msra.mxu0 0
    %104 = vmatprep.subr.bf16.mxu0 0
    %105 = vmatpush1.bf16.msra.mxu0 0
    %106 = vmatprep.subr.bf16.mxu0 0
    %107 = vmatpush1.bf16.msra.mxu0 0
    %108 = vmatprep.subr.bf16.mxu0 0
    %109 = vmatpush1.bf16.msra.mxu0 0
    %110 = vmatprep.subr.bf16.mxu0 0
    %111 = vmatpush1.bf16.msra.mxu0 %v92
    %112 = vmatprep.subr.bf16.mxu0 0
    %113 = vmatpush1.bf16.msra.mxu0 %v91
    %114 = vmatprep.subr.bf16.mxu0 0
    %115 = vmatpush1.bf16.msra.mxu0 %v90
    %116 = vmatprep.subr.bf16.mxu0 0
    %117 = vmatpush2.bf16.msra.mxu0 0
    %118 = vmatprep.subr.bf16.mxu0 0
    %119 = vmatpush2.bf16.msra.mxu0 0
    %120 = vmatprep.subr.bf16.mxu0 0
    %121 = vmatpush2.bf16.msra.mxu0 0
    %122 = vmatprep.subr.bf16.mxu0 0
    %123 = vmatpush2.bf16.msra.mxu0 0
    %124 = vmatprep.subr.bf16.mxu0 0
    %125 = vmatpush2.bf16.msra.mxu0 0
    %126 = vmatprep.subr.bf16.mxu0 0
    %127 = vmatpush2.bf16.msra.mxu0 0
    %128 = vmatprep.subr.bf16.mxu0 0
    %129 = vmatpush2.bf16.msra.mxu0 0
    %130 = vmatprep.subr.bf16.mxu0 0
    %131 = vmatpush2.bf16.msra.mxu0 0
    %132 = vmatprep.mubr.bf16.mxu0 0
    %133 = vmatmul.mubr.bf16.gmra.mxu0 %v98
    %v134 = vpop.f32.mrf.mxu0
    %v135 = vadd.f32 %v76, %v134
    %v136 = vpop.f32.mrf.mxu0
    %v137 = vpop.f32.mrf.mxu0
    %v138 = vpop.f32.mrf.mxu0
    %139 = vdwg.mxu0
    %v140 = vlaneseq
    %v141 = vand.u32 %v140, 127
    %vm142 = vcmp.lt.s32.totalorder %v141, 32
    %v143 = vsel %vm142, %v135, inf
    %vm144 = vcmask 1041408
    %v145 = vsel %vm144, %v143, inf
    %146 = vmin.xlane.f32.xlu0 %v145
    %v147 = vpop.xlane.xlu0 %146
    %vm148 = vcmp.le.f32.partialorder %v143, %v147
    %v149 = vsel %vm148, inf, %v143
    %v150 = vsel %vm144, %v149, inf
    %151 = vmin.xlane.f32.xlu0 %v150
    %v152 = vpop.xlane.xlu0 %151
    %vm153 = vcmp.le.f32.partialorder %v149, %v152
    %v154 = vsel %vm153, inf, %v149
    %v155 = vsel %vm144, %v154, inf
    %156 = vmin.xlane.f32.xlu0 %v155
    %v157 = vpop.xlane.xlu0 %156
    %vm158 = vcmp.le.f32.partialorder %v154, %v157
    %v159 = vsel %vm158, inf, %v154
    %v160 = vsel %vm144, %v159, inf
    %161 = vmin.xlane.f32.xlu0 %v160
    %v162 = vpop.xlane.xlu0 %161
    %vm163 = vcmp.le.f32.partialorder %v159, %v162
    %v164 = vsel %vm163, inf, %v159
    %v165 = vsel %vm144, %v164, inf
    %166 = vmin.xlane.f32.xlu0 %v165
    %v167 = vpop.xlane.xlu0 %166
    %vm168 = vcmp.le.f32.partialorder %v164, %v167
    %v169 = vsel %vm168, inf, %v164
    %v170 = vsel %vm144, %v169, inf
    %171 = vmin.xlane.f32.xlu0 %v170
    %v172 = vpop.xlane.xlu0 %171
    %vm173 = vcmp.le.f32.partialorder %v169, %v172
    %v174 = vsel %vm173, inf, %v169
    %v175 = vsel %vm144, %v174, inf
    %176 = vmin.xlane.f32.xlu0 %v175
    %v177 = vpop.xlane.xlu0 %176
    %vm178 = vcmp.le.f32.partialorder %v174, %v177
    %v179 = vsel %vm178, inf, %v174
    %v180 = vsel %vm144, %v179, inf
    %181 = vmin.xlane.f32.xlu0 %v180
    %v182 = vpop.xlane.xlu0 %181
    %vm183 = vcmp.le.f32.partialorder %v179, %v182
    %v184 = vsel %vm183, inf, %v179
    %v185 = vsel %vm144, %v184, inf
    %186 = vmin.xlane.f32.xlu0 %v185
    %v187 = vpop.xlane.xlu0 %186
    %vm188 = vcmp.le.f32.partialorder %v184, %v187
    %v189 = vsel %vm188, inf, %v184
    %v190 = vsel %vm144, %v189, inf
    %191 = vmin.xlane.f32.xlu0 %v190
    %v192 = vpop.xlane.xlu0 %191
    %vm193 = vcmp.le.f32.partialorder %v189, %v192
    %v194 = vsel %vm193, inf, %v189
    %v195 = vsel %vm144, %v194, inf
    %196 = vmin.xlane.f32.xlu0 %v195
    %v197 = vpop.xlane.xlu0 %196
    %vm198 = vcmp.le.f32.partialorder %v194, %v197
    %v199 = vsel %vm198, inf, %v194
    %v200 = vsel %vm144, %v199, inf
    %201 = vmin.xlane.f32.xlu0 %v200
    %v202 = vpop.xlane.xlu0 %201
    %vm203 = vcmp.le.f32.partialorder %v199, %v202
    %v204 = vsel %vm203, inf, %v199
    %v205 = vsel %vm144, %v204, inf
    %206 = vmin.xlane.f32.xlu0 %v205
    %v207 = vpop.xlane.xlu0 %206
    %vm208 = vcmp.le.f32.partialorder %v204, %v207
    %v209 = vsel %vm208, inf, %v204
    %v210 = vsel %vm144, %v209, inf
    %211 = vmin.xlane.f32.xlu0 %v210
    %v212 = vpop.xlane.xlu0 %211
    %vm213 = vcmp.ge.f32.partialorder %v135, %v212
    %v214 = vsel %vm213, %v135, 0.0
    %215 = vst [vmem:[#allocation8] sm:$0x3] %v214
    // Predicated region
    $region30: #{tpu_custom_call.1} parent=1 // pred_check
      _
    $region31: #{tpu_custom_call.1} parent=1 // pred_check_branch
      %217 = sbr.rel (0) target = $region33
    $region32: #{tpu_custom_call.1} parent=1 // pred_region
      %s219 = ssub.s32 32, 32
      %220 = vsyncadd [#allocation4], %s219
      %s222 = sshll.u32 [#allocation8], 4
      %s223 = int_to_ptr.vmem [resolvable:$true] %s222
      %225 = dma.vmem_to_hbm [thread:$0]  %s223, 32, %s4, [#allocation4]
    $region33: #{tpu_custom_call.1} parent=1 // pred_fallthru
      _
    // Predicated region
    $region34: #{tpu_custom_call.1} parent=1 // pred_check
      _
    $region35: #{tpu_custom_call.1} parent=1 // pred_check_branch
      %227 = sbr.rel (0) target = $region37
    $region36: #{tpu_custom_call.1} parent=1 // pred_region
      %228 = dma.done [#allocation4], 32
    $region37: #{tpu_custom_call.1} parent=1 // pred_fallthru
      _
    %229 = vsyncpa [#allocation3], 1
    %230 = vsyncpa [#allocation6], 1
    %231 = vsyncpa [#allocation4], 1

</llo_original>
